<compile_context>
chip_gen: v5e
topology: v5e:2x2
jax: 0.10.0
libtpu: 0.0.40
codegen_flags: <defaults>
</compile_context>

<pallas_src>
import functools
import math

import jax
import jax.numpy as jnp
from jax.experimental import pallas as pl
from jax.experimental.pallas import tpu as pltpu


def _round_up(x, m):
    return ((x + m - 1) // m) * m


def _conv_relu_kernel(x_ref, w_ref, b_ref, o_ref, col_ref, *,
                      K, Wp, Cin_p, L_out):
    # x_ref:   (Cin_p, L_in)       all images zero-padded + flattened, batch on lanes
    # w_ref:   (Cout, K*K*Cin_p)   flattened taps (zeros in the padded-channel slots)
    # b_ref:   (Cout, 1)
    # o_ref:   (Cout, L_out)       L_out multiple of 128 -> unmasked lane-dense store
    # col_ref: (K*K*Cin_p, L_out)  im2col scratch, every store sublane-tile aligned

    # 1) im2col: each (kh, kw) tap is a contiguous lane window of the flattened
    #    padded image at offset kh*Wp + kw; stack the K*K windows on sublanes.
    for kh in range(K):
        for kw in range(K):
            tap = kh * K + kw
            off = kh * Wp + kw
            col_ref[tap * Cin_p:(tap + 1) * Cin_p, :] = x_ref[:, off:off + L_out]

    # 2) Single MXU matmul over all taps/channels (contraction = K*K*Cin_p),
    #    then bias add + ReLU, one lane-dense store.
    acc = jnp.dot(w_ref[...], col_ref[...], preferred_element_type=jnp.float32)
    acc = acc + b_ref[...]
    o_ref[...] = jnp.maximum(acc, 0.0).astype(o_ref.dtype)


def conv_forward(x_nchw, weight, bias, *, filter_size):
    """Forward pass matching the PyTorch Conv module (conv + bias + ReLU).

    x_nchw: (N, C_in, H, W) float32
    weight: (C_out, C_in, K, K) float32  (PyTorch OIHW layout)
    bias:   (C_out,) float32
    returns (N, C_out, Ho, Wo) with Ho = H + 2*pad - K + 1, pad = ceil(K/2)
    """
    N, Cin, H, W = x_nchw.shape
    Cout = weight.shape[0]
    K = filter_size
    pad = int(math.ceil(K / 2))
    Hp, Wp = H + 2 * pad, W + 2 * pad
    Ho, Wo = Hp - K + 1, Wp - K + 1

    Cin_p = _round_up(Cin, 8)                  # sublane-tile aligned channel count
    L_img = Hp * Wp                            # flat padded size of one image
    L_valid = N * L_img                        # lanes that carry real outputs
    L_out = _round_up(L_valid, 128)            # lane-dense output width
    max_off = (K - 1) * Wp + (K - 1)           # largest tap lane offset
    L_in = _round_up(L_out + max_off, 128)     # input lanes incl. tap tail (no OOB)

    # One wrapper-side pad (channels -> Cin_p, spatial halo, flat zero tail); the
    # kernel never memsets or copies rows.  Valid outputs of image n only read
    # that image's own padded slab; wrap columns / extra pad rows that read into
    # the next image are discarded by the wrapper slice below.
    x_pad = jnp.pad(x_nchw, ((0, 0), (0, Cin_p - Cin), (pad, pad), (pad, pad)))
    x_flat = jnp.transpose(x_pad, (1, 0, 2, 3)).reshape(Cin_p, L_valid)
    x_flat = jnp.pad(x_flat, ((0, 0), (0, L_in - L_valid)))

    # (Cout, Cin, K, K) -> (Cout, K*K*Cin_p); padded-channel weight columns are 0.
    w_pad = jnp.pad(weight, ((0, 0), (0, Cin_p - Cin), (0, 0), (0, 0)))
    w_flat = jnp.transpose(w_pad, (0, 2, 3, 1)).reshape(Cout, K * K * Cin_p)
    b_col = bias.reshape(Cout, 1)

    kernel = functools.partial(_conv_relu_kernel, K=K, Wp=Wp,
                               Cin_p=Cin_p, L_out=L_out)

    cost = pl.CostEstimate(
        flops=2 * N * Cout * K * K * Cin * Ho * Wo,
        transcendentals=0,
        bytes_accessed=4 * (Cin_p * L_in + Cout * K * K * Cin_p + Cout
                            + Cout * L_out),
    )

    out_flat = pl.pallas_call(
        kernel,
        out_shape=jax.ShapeDtypeStruct((Cout, L_out), x_nchw.dtype),
        grid_spec=pltpu.PrefetchScalarGridSpec(
            num_scalar_prefetch=0,
            grid=(1,),                                      # single overhead-free step
            in_specs=[
                pl.BlockSpec((Cin_p, L_in), lambda i: (0, 0)),
                pl.BlockSpec((Cout, K * K * Cin_p), lambda i: (0, 0)),
                pl.BlockSpec((Cout, 1), lambda i: (0, 0)),
            ],
            out_specs=pl.BlockSpec((Cout, L_out), lambda i: (0, 0)),
            scratch_shapes=[
                pltpu.VMEM((K * K * Cin_p, L_out), jnp.float32),  # im2col scratch
            ],
        ),
        compiler_params=pltpu.CompilerParams(
            dimension_semantics=("arbitrary",)),
        cost_estimate=cost,
    )(x_flat, w_flat, b_col)

    # Outputs live at the same flat stride as the padded input; rows >= Ho and
    # columns >= Wo (wrap/garbage) plus the 128-alignment tail are sliced off.
    out = out_flat[:, :L_valid].reshape(Cout, N, Hp, Wp)
    out = jnp.transpose(out, (1, 0, 2, 3))[:, :, :Ho, :Wo]
    return out


def init_params(key, n_in, n_out, filter_size):
    """Deterministic glorot_uniform (xavier_uniform) init, bias = 0."""
    fan_in = n_in * filter_size * filter_size
    fan_out = n_out * filter_size * filter_size
    limit = math.sqrt(6.0 / (fan_in + fan_out))
    weight = jax.random.uniform(
        key, (n_out, n_in, filter_size, filter_size),
        minval=-limit, maxval=limit, dtype=jnp.float32)
    bias = jnp.zeros((n_out,), jnp.float32)
    return weight, bias


if __name__ == "__main__":
    n_in, n_out, filter_size = 4, 8, 3
    N, H, W = 2, 16, 16

    key = jax.random.PRNGKey(0)
    k_x, k_w = jax.random.split(key)
    x = jax.random.normal(k_x, (N, n_in, H, W), dtype=jnp.float32)
    weight, bias = init_params(k_w, n_in, n_out, filter_size)

    out = conv_forward(x, weight, bias, filter_size=filter_size)
    out = jax.block_until_ready(out)

    # Reference check against XLA's conv (same semantics as nn.Conv2d).
    pad = int(math.ceil(filter_size / 2))
    ref = jax.lax.conv_general_dilated(
        x, weight, window_strides=(1, 1),
        padding=((pad, pad), (pad, pad)),
        dimension_numbers=("NCHW", "OIHW", "NCHW"))
    ref = jnp.maximum(ref + bias.reshape(1, n_out, 1, 1), 0.0)
    assert out.shape == (N, n_out, H + 2, W + 2), out.shape
    assert jnp.max(jnp.abs(out - ref)) < 1e-4

    print("KERNEL_OK")
</pallas_src>

<mosaic_0001>
module attributes {stable_mosaic.version = 11 : i64} {
  func.func @_conv_relu_kernel(%arg0: i32, %arg1: memref<8x1024xf32, #tpu.memory_space<vmem>>, %arg2: memref<8x72xf32, #tpu.memory_space<vmem>>, %arg3: memref<8x1xf32, #tpu.memory_space<vmem>>, %arg4: memref<8x896xf32, #tpu.memory_space<vmem>>, %arg5: memref<72x896xf32, #tpu.memory_space<vmem>>) attributes {dimension_semantics = [#tpu.dimension_semantics<arbitrary>], iteration_bounds = array<i64: 1>, scalar_prefetch = 0 : i64, scratch_operands = 1 : i64, tpu.core_type = #tpu.core_type<tc>, window_params = [{pipeline_mode = #tpu.pipeline_mode<synchronous>, transform_indices = @transform_0, window_bounds = array<i64: 8, 1024>}, {pipeline_mode = #tpu.pipeline_mode<synchronous>, transform_indices = @transform_1, window_bounds = array<i64: 8, 72>}, {pipeline_mode = #tpu.pipeline_mode<synchronous>, transform_indices = @transform_2, window_bounds = array<i64: 8, 1>}, {pipeline_mode = #tpu.pipeline_mode<synchronous>, transform_indices = @transform_3, window_bounds = array<i64: 8, 896>}]} {
    %c0 = arith.constant 0 : index
    %c0_0 = arith.constant 0 : index
    %0 = vector.load %arg1[%c0, %c0_0] : memref<8x1024xf32, #tpu.memory_space<vmem>>, vector<8x896xf32>
    %c0_1 = arith.constant 0 : index
    %c0_2 = arith.constant 0 : index
    %1 = vector.load %arg5[%c0_1, %c0_2] : memref<72x896xf32, #tpu.memory_space<vmem>>, vector<8x896xf32>
    tpu.vector_store %arg5[%c0_1, %c0_2], %0 {strides = array<i32>} : memref<72x896xf32, #tpu.memory_space<vmem>>, vector<8x896xf32>,
    %c0_3 = arith.constant 0 : index
    %c1 = arith.constant 1 : index
    %2 = vector.load %arg1[%c0_3, %c1] : memref<8x1024xf32, #tpu.memory_space<vmem>>, vector<8x896xf32>
    %c8 = arith.constant 8 : index
    %c0_4 = arith.constant 0 : index
    %3 = vector.load %arg5[%c8, %c0_4] : memref<72x896xf32, #tpu.memory_space<vmem>>, vector<8x896xf32>
    tpu.vector_store %arg5[%c8, %c0_4], %2 {strides = array<i32>} : memref<72x896xf32, #tpu.memory_space<vmem>>, vector<8x896xf32>,
    %c0_5 = arith.constant 0 : index
    %c2 = arith.constant 2 : index
    %4 = vector.load %arg1[%c0_5, %c2] : memref<8x1024xf32, #tpu.memory_space<vmem>>, vector<8x896xf32>
    %c16 = arith.constant 16 : index
    %c0_6 = arith.constant 0 : index
    %5 = vector.load %arg5[%c16, %c0_6] : memref<72x896xf32, #tpu.memory_space<vmem>>, vector<8x896xf32>
    tpu.vector_store %arg5[%c16, %c0_6], %4 {strides = array<i32>} : memref<72x896xf32, #tpu.memory_space<vmem>>, vector<8x896xf32>,
    %c0_7 = arith.constant 0 : index
    %c20 = arith.constant 20 : index
    %6 = vector.load %arg1[%c0_7, %c20] : memref<8x1024xf32, #tpu.memory_space<vmem>>, vector<8x896xf32>
    %c24 = arith.constant 24 : index
    %c0_8 = arith.constant 0 : index
    %7 = vector.load %arg5[%c24, %c0_8] : memref<72x896xf32, #tpu.memory_space<vmem>>, vector<8x896xf32>
    tpu.vector_store %arg5[%c24, %c0_8], %6 {strides = array<i32>} : memref<72x896xf32, #tpu.memory_space<vmem>>, vector<8x896xf32>,
    %c0_9 = arith.constant 0 : index
    %c21 = arith.constant 21 : index
    %8 = vector.load %arg1[%c0_9, %c21] : memref<8x1024xf32, #tpu.memory_space<vmem>>, vector<8x896xf32>
    %c32 = arith.constant 32 : index
    %c0_10 = arith.constant 0 : index
    %9 = vector.load %arg5[%c32, %c0_10] : memref<72x896xf32, #tpu.memory_space<vmem>>, vector<8x896xf32>
    tpu.vector_store %arg5[%c32, %c0_10], %8 {strides = array<i32>} : memref<72x896xf32, #tpu.memory_space<vmem>>, vector<8x896xf32>,
    %c0_11 = arith.constant 0 : index
    %c22 = arith.constant 22 : index
    %10 = vector.load %arg1[%c0_11, %c22] : memref<8x1024xf32, #tpu.memory_space<vmem>>, vector<8x896xf32>
    %c40 = arith.constant 40 : index
    %c0_12 = arith.constant 0 : index
    %11 = vector.load %arg5[%c40, %c0_12] : memref<72x896xf32, #tpu.memory_space<vmem>>, vector<8x896xf32>
    tpu.vector_store %arg5[%c40, %c0_12], %10 {strides = array<i32>} : memref<72x896xf32, #tpu.memory_space<vmem>>, vector<8x896xf32>,
    %c0_13 = arith.constant 0 : index
    %c40_14 = arith.constant 40 : index
    %12 = vector.load %arg1[%c0_13, %c40_14] : memref<8x1024xf32, #tpu.memory_space<vmem>>, vector<8x896xf32>
    %c48 = arith.constant 48 : index
    %c0_15 = arith.constant 0 : index
    %13 = vector.load %arg5[%c48, %c0_15] : memref<72x896xf32, #tpu.memory_space<vmem>>, vector<8x896xf32>
    tpu.vector_store %arg5[%c48, %c0_15], %12 {strides = array<i32>} : memref<72x896xf32, #tpu.memory_space<vmem>>, vector<8x896xf32>,
    %c0_16 = arith.constant 0 : index
    %c41 = arith.constant 41 : index
    %14 = vector.load %arg1[%c0_16, %c41] : memref<8x1024xf32, #tpu.memory_space<vmem>>, vector<8x896xf32>
    %c56 = arith.constant 56 : index
    %c0_17 = arith.constant 0 : index
    %15 = vector.load %arg5[%c56, %c0_17] : memref<72x896xf32, #tpu.memory_space<vmem>>, vector<8x896xf32>
    tpu.vector_store %arg5[%c56, %c0_17], %14 {strides = array<i32>} : memref<72x896xf32, #tpu.memory_space<vmem>>, vector<8x896xf32>,
    %c0_18 = arith.constant 0 : index
    %c42 = arith.constant 42 : index
    %16 = vector.load %arg1[%c0_18, %c42] : memref<8x1024xf32, #tpu.memory_space<vmem>>, vector<8x896xf32>
    %c64 = arith.constant 64 : index
    %c0_19 = arith.constant 0 : index
    %17 = vector.load %arg5[%c64, %c0_19] : memref<72x896xf32, #tpu.memory_space<vmem>>, vector<8x896xf32>
    tpu.vector_store %arg5[%c64, %c0_19], %16 {strides = array<i32>} : memref<72x896xf32, #tpu.memory_space<vmem>>, vector<8x896xf32>,
    %c0_20 = arith.constant 0 : index
    %c0_21 = arith.constant 0 : index
    %18 = vector.load %arg2[%c0_20, %c0_21] : memref<8x72xf32, #tpu.memory_space<vmem>>, vector<8x72xf32>
    %c0_22 = arith.constant 0 : index
    %c0_23 = arith.constant 0 : index
    %19 = vector.load %arg5[%c0_22, %c0_23] : memref<72x896xf32, #tpu.memory_space<vmem>>, vector<72x896xf32>
    %cst = arith.constant dense<0.000000e+00> : vector<8x896xf32>
    %20 = tpu.matmul %18, %19, %cst {dimension_numbers = #tpu.dot_dimension_numbers<[1], [0], [0], [1], [0, 0, 1, 1], [], []>} : vector<8x72xf32>, vector<72x896xf32>, vector<8x896xf32> -> vector<8x896xf32>
    %c0_24 = arith.constant 0 : index
    %c0_25 = arith.constant 0 : index
    %21 = vector.load %arg3[%c0_24, %c0_25] : memref<8x1xf32, #tpu.memory_space<vmem>>, vector<8x1xf32>
    %22 = vector.broadcast %21 : vector<8x1xf32> to vector<8x896xf32>
    %23 = arith.addf %20, %22 : vector<8x896xf32>
    %cst_26 = arith.constant 0.000000e+00 : f32
    %24 = vector.broadcast %cst_26 : f32 to vector<8x896xf32>
    %25 = arith.maximumf %23, %24 : vector<8x896xf32>
    %c0_27 = arith.constant 0 : index
    %c0_28 = arith.constant 0 : index
    %26 = vector.load %arg4[%c0_27, %c0_28] : memref<8x896xf32, #tpu.memory_space<vmem>>, vector<8x896xf32>
    tpu.vector_store %arg4[%c0_27, %c0_28], %25 {strides = array<i32>} : memref<8x896xf32, #tpu.memory_space<vmem>>, vector<8x896xf32>,
    return
  }
  func.func @transform_0(%arg0: i32) -> (i32, i32) {
    %c0_i32 = arith.constant 0 : i32
    %c0_i32_0 = arith.constant 0 : i32
    %c0_i32_1 = arith.constant 0 : i32
    return %c0_i32, %c0_i32_0 : i32, i32
  }
  func.func @transform_1(%arg0: i32) -> (i32, i32) {
    %c0_i32 = arith.constant 0 : i32
    %c0_i32_0 = arith.constant 0 : i32
    %c0_i32_1 = arith.constant 0 : i32
    return %c0_i32, %c0_i32_0 : i32, i32
  }
  func.func @transform_2(%arg0: i32) -> (i32, i32) {
    %c0_i32 = arith.constant 0 : i32
    %c0_i32_0 = arith.constant 0 : i32
    %c0_i32_1 = arith.constant 0 : i32
    return %c0_i32, %c0_i32_0 : i32, i32
  }
  func.func @transform_3(%arg0: i32) -> (i32, i32) {
    %c0_i32 = arith.constant 0 : i32
    %c0_i32_0 = arith.constant 0 : i32
    %c0_i32_1 = arith.constant 0 : i32
    return %c0_i32, %c0_i32_0 : i32, i32
  }
}

</mosaic_0001>

<llo_original>
// kernel: tpu_custom_call.1
$region0: #{tpu_custom_call.1}
  #allocation0 [shape = 'u32[]', space=smem, size = 0x4, offset = 0x4, fixed_abs, tag = 'smem constant byte address 0x4 - core index']
  #allocation1 [shape = 'u32[72,128]{1,0:T(1,128)}', space=vmem, size = 0x9000, scoped, tag = 'internal scratch']
  #allocation2 [shape = 'f32[72,896]{1,0:T(8,128)}', space=vmem, size = 0x3f000, scoped, tag = 'scratch operand']
  %s0 = inlined_call_operand.hbm [shape: f32[8,1024], index: 0, kind: input, shape index: {}]
  %s1 = inlined_call_operand.vmem [shape: f32[8,72], index: 1, kind: input, shape index: {}]
  %s2 = inlined_call_operand.vmem [shape: f32[8,1], index: 2, kind: input, shape index: {}]
  %s3 = inlined_call_operand.hbm [shape: f32[8,896], index: 3, kind: output, shape index: {}]
  %s4 = sld [smem:[#allocation0]]
  $region26: #{tpu_custom_call.1} parent=0
    _
  %s6 = ssub.s32 1, %s4
  %s7 = scalar_select 0, %s6, %s4
  $region1: #{tpu_custom_call.1} parent=0
    #allocation3 [shape = 'u8[32768]{0}', space=vmem, size = 0x8000, scoped, tag = 'input window, operand 0, single buffered']
    #allocation4 [shape = 's32[1]{0}', space=sflag, size = 0x4, scoped, tag = 'scoped memory for tpu_custom_call.1']
    #allocation5 [shape = 's32[1]{0}', space=sflag, size = 0x4, scoped, tag = 'scoped memory for tpu_custom_call.1']
    #allocation6 [shape = 'u8[28672]{0}', space=vmem, size = 0x7000, scoped, tag = 'output window, operand 0, single buffered']
    %8 = vsyncpa [#allocation4], 0
    %9 = vsyncpa [#allocation5], 0
    // Predicated region
    $region2: #{tpu_custom_call.1} parent=1 // pred_check
      _
    $region3: #{tpu_custom_call.1} parent=1 // pred_check_branch
      %11 = sbr.rel (0) target = $region5
    $region4: #{tpu_custom_call.1} parent=1 // pred_region
      %13 = vsyncadd [#allocation4], 0
      %s15 = sshll.u32 %s0, 4
      %s16 = int_to_ptr.hbm [resolvable:$true] %s15
      %s17 = sshll.u32 [#allocation3], 4
      %s18 = int_to_ptr.vmem [resolvable:$true] %s17
      %20 = dma.hbm_to_vmem [thread:$0]  %s16, 1024, %s18, [#allocation4]
    $region5: #{tpu_custom_call.1} parent=1 // pred_fallthru
      _
    // Predicated region
    $region6: #{tpu_custom_call.1} parent=1 // pred_check
      _
    $region7: #{tpu_custom_call.1} parent=1 // pred_check_branch
      %22 = sbr.rel (0) target = $region9
    $region8: #{tpu_custom_call.1} parent=1 // pred_region
      _
    $region9: #{tpu_custom_call.1} parent=1 // pred_fallthru
      _
    // Predicated region
    $region10: #{tpu_custom_call.1} parent=1 // pred_check
      _
    $region11: #{tpu_custom_call.1} parent=1 // pred_check_branch
      %24 = sbr.rel (0) target = $region13
    $region12: #{tpu_custom_call.1} parent=1 // pred_region
      _
    $region13: #{tpu_custom_call.1} parent=1 // pred_fallthru
      _
    // Predicated region
    $region14: #{tpu_custom_call.1} parent=1 // pred_check
      _
    $region15: #{tpu_custom_call.1} parent=1 // pred_check_branch
      %26 = sbr.rel (0) target = $region17
    $region16: #{tpu_custom_call.1} parent=1 // pred_region
      %28 = dma.done [#allocation4], 1024
    $region17: #{tpu_custom_call.1} parent=1 // pred_fallthru
      _
    %v29 = vld [vmem:[#allocation3] sm:$0xff]
    %v30 = vld [vmem:[#allocation3 + $0x8] sm:$0xff]
    %v31 = vld [vmem:[#allocation3 + $0x10] sm:$0xff]
    %v32 = vld [vmem:[#allocation3 + $0x18] sm:$0xff]
    %v33 = vld [vmem:[#allocation3 + $0x20] sm:$0xff]
    %v34 = vld [vmem:[#allocation3 + $0x28] sm:$0xff]
    %v35 = vld [vmem:[#allocation3 + $0x30] sm:$0xff]
    %36 = vst [vmem:[#allocation2] sm:$0xff] %v29
    %37 = vst [vmem:[#allocation2 + $0x8] sm:$0xff] %v30
    %38 = vst [vmem:[#allocation2 + $0x10] sm:$0xff] %v31
    %39 = vst [vmem:[#allocation2 + $0x18] sm:$0xff] %v32
    %40 = vst [vmem:[#allocation2 + $0x20] sm:$0xff] %v33
    %41 = vst [vmem:[#allocation2 + $0x28] sm:$0xff] %v34
    %42 = vst [vmem:[#allocation2 + $0x30] sm:$0xff] %v35
    %v43 = vld [vmem:[#allocation3] sm:$0xff]
    %v44 = vld [vmem:[#allocation3 + $0x8] sm:$0xff]
    %v45 = vld [vmem:[#allocation3 + $0x10] sm:$0xff]
    %v46 = vld [vmem:[#allocation3 + $0x18] sm:$0xff]
    %v47 = vld [vmem:[#allocation3 + $0x20] sm:$0xff]
    %v48 = vld [vmem:[#allocation3 + $0x28] sm:$0xff]
    %v49 = vld [vmem:[#allocation3 + $0x30] sm:$0xff]
    %v50 = vld [vmem:[#allocation3 + $0x38] sm:$0xff]
    %59 = vrot.lane.b32.xlu0 %v43, 127
    %v60 = vpop.permute.xlu0 %59
    %61 = vrot.lane.b32.xlu0 %v44, 127
    %v62 = vpop.permute.xlu0 %61
    %63 = vrot.lane.b32.xlu0 %v45, 127
    %v64 = vpop.permute.xlu0 %63
    %65 = vrot.lane.b32.xlu0 %v46, 127
    %v66 = vpop.permute.xlu0 %65
    %67 = vrot.lane.b32.xlu0 %v47, 127
    %v68 = vpop.permute.xlu0 %67
    %69 = vrot.lane.b32.xlu0 %v48, 127
    %v70 = vpop.permute.xlu0 %69
    %71 = vrot.lane.b32.xlu0 %v49, 127
    %v72 = vpop.permute.xlu0 %71
    %73 = vrot.lane.b32.xlu0 %v50, 127
    %v74 = vpop.permute.xlu0 %73
    %vm75 = vcmask 1039360
    %v76 = vsel %vm75, %v60, %v62
    %v77 = vsel %vm75, %v62, %v64
    %v78 = vsel %vm75, %v64, %v66
    %v79 = vsel %vm75, %v66, %v68
    %v80 = vsel %vm75, %v68, %v70
    %v81 = vsel %vm75, %v70, %v72
    %v82 = vsel %vm75, %v72, %v74
    %90 = vst [vmem:[#allocation2 + $0x38] sm:$0xff] %v76
    %91 = vst [vmem:[#allocation2 + $0x40] sm:$0xff] %v77
    %92 = vst [vmem:[#allocation2 + $0x48] sm:$0xff] %v78
    %93 = vst [vmem:[#allocation2 + $0x50] sm:$0xff] %v79
    %94 = vst [vmem:[#allocation2 + $0x58] sm:$0xff] %v80
    %95 = vst [vmem:[#allocation2 + $0x60] sm:$0xff] %v81
    %96 = vst [vmem:[#allocation2 + $0x68] sm:$0xff] %v82
    %v97 = vld [vmem:[#allocation3] sm:$0xff]
    %v98 = vld [vmem:[#allocation3 + $0x8] sm:$0xff]
    %v99 = vld [vmem:[#allocation3 + $0x10] sm:$0xff]
    %v100 = vld [vmem:[#allocation3 + $0x18] sm:$0xff]
    %v101 = vld [vmem:[#allocation3 + $0x20] sm:$0xff]
    %v102 = vld [vmem:[#allocation3 + $0x28] sm:$0xff]
    %v103 = vld [vmem:[#allocation3 + $0x30] sm:$0xff]
    %v104 = vld [vmem:[#allocation3 + $0x38] sm:$0xff]
    %113 = vrot.lane.b32.xlu0 %v97, 126
    %v114 = vpop.permute.xlu0 %113
    %115 = vrot.lane.b32.xlu0 %v98, 126
    %v116 = vpop.permute.xlu0 %115
    %117 = vrot.lane.b32.xlu0 %v99, 126
    %v118 = vpop.permute.xlu0 %117
    %119 = vrot.lane.b32.xlu0 %v100, 126
    %v120 = vpop.permute.xlu0 %119
    %121 = vrot.lane.b32.xlu0 %v101, 126
    %v122 = vpop.permute.xlu0 %121
    %123 = vrot.lane.b32.xlu0 %v102, 126
    %v124 = vpop.permute.xlu0 %123
    %125 = vrot.lane.b32.xlu0 %v103, 126
    %v126 = vpop.permute.xlu0 %125
    %127 = vrot.lane.b32.xlu0 %v104, 126
    %v128 = vpop.permute.xlu0 %127
    %vm129 = vcmask 1031168
    %v130 = vsel %vm129, %v114, %v116
    %v131 = vsel %vm129, %v116, %v118
    %v132 = vsel %vm129, %v118, %v120
    %v133 = vsel %vm129, %v120, %v122
    %v134 = vsel %vm129, %v122, %v124
    %v135 = vsel %vm129, %v124, %v126
    %v136 = vsel %vm129, %v126, %v128
    %144 = vst [vmem:[#allocation2 + $0x70] sm:$0xff] %v130
    %145 = vst [vmem:[#allocation2 + $0x78] sm:$0xff] %v131
    %146 = vst [vmem:[#allocation2 + $0x80] sm:$0xff] %v132
    %147 = vst [vmem:[#allocation2 + $0x88] sm:$0xff] %v133
    %148 = vst [vmem:[#allocation2 + $0x90] sm:$0xff] %v134
    %149 = vst [vmem:[#allocation2 + $0x98] sm:$0xff] %v135
    %150 = vst [vmem:[#allocation2 + $0xa0] sm:$0xff] %v136
    %v151 = vld [vmem:[#allocation3] sm:$0xff]
    %v152 = vld [vmem:[#allocation3 + $0x8] sm:$0xff]
    %v153 = vld [vmem:[#allocation3 + $0x10] sm:$0xff]
    %v154 = vld [vmem:[#allocation3 + $0x18] sm:$0xff]
    %v155 = vld [vmem:[#allocation3 + $0x20] sm:$0xff]
    %v156 = vld [vmem:[#allocation3 + $0x28] sm:$0xff]
    %v157 = vld [vmem:[#allocation3 + $0x30] sm:$0xff]
    %v158 = vld [vmem:[#allocation3 + $0x38] sm:$0xff]
    %167 = vrot.lane.b32.xlu0 %v151, 108
    %v168 = vpop.permute.xlu0 %167
    %169 = vrot.lane.b32.xlu0 %v152, 108
    %v170 = vpop.permute.xlu0 %169
    %171 = vrot.lane.b32.xlu0 %v153, 108
    %v172 = vpop.permute.xlu0 %171
    %173 = vrot.lane.b32.xlu0 %v154, 108
    %v174 = vpop.permute.xlu0 %173
    %175 = vrot.lane.b32.xlu0 %v155, 108
    %v176 = vpop.permute.xlu0 %175
    %177 = vrot.lane.b32.xlu0 %v156, 108
    %v178 = vpop.permute.xlu0 %177
    %179 = vrot.lane.b32.xlu0 %v157, 108
    %v180 = vpop.permute.xlu0 %179
    %181 = vrot.lane.b32.xlu0 %v158, 108
    %v182 = vpop.permute.xlu0 %181
    %vm183 = vcmask 883712
    %v184 = vsel %vm183, %v168, %v170
    %v185 = vsel %vm183, %v170, %v172
    %v186 = vsel %vm183, %v172, %v174
    %v187 = vsel %vm183, %v174, %v176
    %v188 = vsel %vm183, %v176, %v178
    %v189 = vsel %vm183, %v178, %v180
    %v190 = vsel %vm183, %v180, %v182
    %198 = vst [vmem:[#allocation2 + $0xa8] sm:$0xff] %v184
    %199 = vst [vmem:[#allocation2 + $0xb0] sm:$0xff] %v185
    %200 = vst [vmem:[#allocation2 + $0xb8] sm:$0xff] %v186
    %201 = vst [vmem:[#allocation2 + $0xc0] sm:$0xff] %v187
    %202 = vst [vmem:[#allocation2 + $0xc8] sm:$0xff] %v188
    %203 = vst [vmem:[#allocation2 + $0xd0] sm:$0xff] %v189
    %204 = vst [vmem:[#allocation2 + $0xd8] sm:$0xff] %v190
    %v205 = vld [vmem:[#allocation3] sm:$0xff]
    %v206 = vld [vmem:[#allocation3 + $0x8] sm:$0xff]
    %v207 = vld [vmem:[#allocation3 + $0x10] sm:$0xff]
    %v208 = vld [vmem:[#allocation3 + $0x18] sm:$0xff]
    %v209 = vld [vmem:[#allocation3 + $0x20] sm:$0xff]
    %v210 = vld [vmem:[#allocation3 + $0x28] sm:$0xff]
    %v211 = vld [vmem:[#allocation3 + $0x30] sm:$0xff]
    %v212 = vld [vmem:[#allocation3 + $0x38] sm:$0xff]
    %221 = vrot.lane.b32.xlu0 %v205, 107
    %v222 = vpop.permute.xlu0 %221
    %223 = vrot.lane.b32.xlu0 %v206, 107
    %v224 = vpop.permute.xlu0 %223
    %225 = vrot.lane.b32.xlu0 %v207, 107
    %v226 = vpop.permute.xlu0 %225
    %227 = vrot.lane.b32.xlu0 %v208, 107
    %v228 = vpop.permute.xlu0 %227
    %229 = vrot.lane.b32.xlu0 %v209, 107
    %v230 = vpop.permute.xlu0 %229
    %231 = vrot.lane.b32.xlu0 %v210, 107
    %v232 = vpop.permute.xlu0 %231
    %233 = vrot.lane.b32.xlu0 %v211, 107
    %v234 = vpop.permute.xlu0 %233
    %235 = vrot.lane.b32.xlu0 %v212, 107
    %v236 = vpop.permute.xlu0 %235
    %vm237 = vcmask 875520
    %v238 = vsel %vm237, %v222, %v224
    %v239 = vsel %vm237, %v224, %v226
    %v240 = vsel %vm237, %v226, %v228
    %v241 = vsel %vm237, %v228, %v230
    %v242 = vsel %vm237, %v230, %v232
    %v243 = vsel %vm237, %v232, %v234
    %v244 = vsel %vm237, %v234, %v236
    %252 = vst [vmem:[#allocation2 + $0xe0] sm:$0xff] %v238
    %253 = vst [vmem:[#allocation2 + $0xe8] sm:$0xff] %v239
    %254 = vst [vmem:[#allocation2 + $0xf0] sm:$0xff] %v240
    %255 = vst [vmem:[#allocation2 + $0xf8] sm:$0xff] %v241
    %256 = vst [vmem:[#allocation2 + $0x100] sm:$0xff] %v242
    %257 = vst [vmem:[#allocation2 + $0x108] sm:$0xff] %v243
    %258 = vst [vmem:[#allocation2 + $0x110] sm:$0xff] %v244
    %v259 = vld [vmem:[#allocation3] sm:$0xff]
    %v260 = vld [vmem:[#allocation3 + $0x8] sm:$0xff]
    %v261 = vld [vmem:[#allocation3 + $0x10] sm:$0xff]
    %v262 = vld [vmem:[#allocation3 + $0x18] sm:$0xff]
    %v263 = vld [vmem:[#allocation3 + $0x20] sm:$0xff]
    %v264 = vld [vmem:[#allocation3 + $0x28] sm:$0xff]
    %v265 = vld [vmem:[#allocation3 + $0x30] sm:$0xff]
    %v266 = vld [vmem:[#allocation3 + $0x38] sm:$0xff]
    %275 = vrot.lane.b32.xlu0 %v259, 106
    %v276 = vpop.permute.xlu0 %275
    %277 = vrot.lane.b32.xlu0 %v260, 106
    %v278 = vpop.permute.xlu0 %277
    %279 = vrot.lane.b32.xlu0 %v261, 106
    %v280 = vpop.permute.xlu0 %279
    %281 = vrot.lane.b32.xlu0 %v262, 106
    %v282 = vpop.permute.xlu0 %281
    %283 = vrot.lane.b32.xlu0 %v263, 106
    %v284 = vpop.permute.xlu0 %283
    %285 = vrot.lane.b32.xlu0 %v264, 106
    %v286 = vpop.permute.xlu0 %285
    %287 = vrot.lane.b32.xlu0 %v265, 106
    %v288 = vpop.permute.xlu0 %287
    %289 = vrot.lane.b32.xlu0 %v266, 106
    %v290 = vpop.permute.xlu0 %289
    %vm291 = vcmask 867328
    %v292 = vsel %vm291, %v276, %v278
    %v293 = vsel %vm291, %v278, %v280
    %v294 = vsel %vm291, %v280, %v282
    %v295 = vsel %vm291, %v282, %v284
    %v296 = vsel %vm291, %v284, %v286
    %v297 = vsel %vm291, %v286, %v288
    %v298 = vsel %vm291, %v288, %v290
    %306 = vst [vmem:[#allocation2 + $0x118] sm:$0xff] %v292
    %307 = vst [vmem:[#allocation2 + $0x120] sm:$0xff] %v293
    %308 = vst [vmem:[#allocation2 + $0x128] sm:$0xff] %v294
    %309 = vst [vmem:[#allocation2 + $0x130] sm:$0xff] %v295
    %310 = vst [vmem:[#allocation2 + $0x138] sm:$0xff] %v296
    %311 = vst [vmem:[#allocation2 + $0x140] sm:$0xff] %v297
    %312 = vst [vmem:[#allocation2 + $0x148] sm:$0xff] %v298
    %v313 = vld [vmem:[#allocation3] sm:$0xff]
    %v314 = vld [vmem:[#allocation3 + $0x8] sm:$0xff]
    %v315 = vld [vmem:[#allocation3 + $0x10] sm:$0xff]
    %v316 = vld [vmem:[#allocation3 + $0x18] sm:$0xff]
    %v317 = vld [vmem:[#allocation3 + $0x20] sm:$0xff]
    %v318 = vld [vmem:[#allocation3 + $0x28] sm:$0xff]
    %v319 = vld [vmem:[#allocation3 + $0x30] sm:$0xff]
    %v320 = vld [vmem:[#allocation3 + $0x38] sm:$0xff]
    %329 = vrot.lane.b32.xlu0 %v313, 88
    %v330 = vpop.permute.xlu0 %329
    %331 = vrot.lane.b32.xlu0 %v314, 88
    %v332 = vpop.permute.xlu0 %331
    %333 = vrot.lane.b32.xlu0 %v315, 88
    %v334 = vpop.permute.xlu0 %333
    %335 = vrot.lane.b32.xlu0 %v316, 88
    %v336 = vpop.permute.xlu0 %335
    %337 = vrot.lane.b32.xlu0 %v317, 88
    %v338 = vpop.permute.xlu0 %337
    %339 = vrot.lane.b32.xlu0 %v318, 88
    %v340 = vpop.permute.xlu0 %339
    %341 = vrot.lane.b32.xlu0 %v319, 88
    %v342 = vpop.permute.xlu0 %341
    %343 = vrot.lane.b32.xlu0 %v320, 88
    %v344 = vpop.permute.xlu0 %343
    %vm345 = vcmask 719872
    %v346 = vsel %vm345, %v330, %v332
    %v347 = vsel %vm345, %v332, %v334
    %v348 = vsel %vm345, %v334, %v336
    %v349 = vsel %vm345, %v336, %v338
    %v350 = vsel %vm345, %v338, %v340
    %v351 = vsel %vm345, %v340, %v342
    %v352 = vsel %vm345, %v342, %v344
    %360 = vst [vmem:[#allocation2 + $0x150] sm:$0xff] %v346
    %361 = vst [vmem:[#allocation2 + $0x158] sm:$0xff] %v347
    %362 = vst [vmem:[#allocation2 + $0x160] sm:$0xff] %v348
    %363 = vst [vmem:[#allocation2 + $0x168] sm:$0xff] %v349
    %364 = vst [vmem:[#allocation2 + $0x170] sm:$0xff] %v350
    %365 = vst [vmem:[#allocation2 + $0x178] sm:$0xff] %v351
    %366 = vst [vmem:[#allocation2 + $0x180] sm:$0xff] %v352
    %v367 = vld [vmem:[#allocation3] sm:$0xff]
    %v368 = vld [vmem:[#allocation3 + $0x8] sm:$0xff]
    %v369 = vld [vmem:[#allocation3 + $0x10] sm:$0xff]
    %v370 = vld [vmem:[#allocation3 + $0x18] sm:$0xff]
    %v371 = vld [vmem:[#allocation3 + $0x20] sm:$0xff]
    %v372 = vld [vmem:[#allocation3 + $0x28] sm:$0xff]
    %v373 = vld [vmem:[#allocation3 + $0x30] sm:$0xff]
    %v374 = vld [vmem:[#allocation3 + $0x38] sm:$0xff]
    %383 = vrot.lane.b32.xlu0 %v367, 87
    %v384 = vpop.permute.xlu0 %383
    %385 = vrot.lane.b32.xlu0 %v368, 87
    %v386 = vpop.permute.xlu0 %385
    %387 = vrot.lane.b32.xlu0 %v369, 87
    %v388 = vpop.permute.xlu0 %387
    %389 = vrot.lane.b32.xlu0 %v370, 87
    %v390 = vpop.permute.xlu0 %389
    %391 = vrot.lane.b32.xlu0 %v371, 87
    %v392 = vpop.permute.xlu0 %391
    %393 = vrot.lane.b32.xlu0 %v372, 87
    %v394 = vpop.permute.xlu0 %393
    %395 = vrot.lane.b32.xlu0 %v373, 87
    %v396 = vpop.permute.xlu0 %395
    %397 = vrot.lane.b32.xlu0 %v374, 87
    %v398 = vpop.permute.xlu0 %397
    %vm399 = vcmask 711680
    %v400 = vsel %vm399, %v384, %v386
    %v401 = vsel %vm399, %v386, %v388
    %v402 = vsel %vm399, %v388, %v390
    %v403 = vsel %vm399, %v390, %v392
    %v404 = vsel %vm399, %v392, %v394
    %v405 = vsel %vm399, %v394, %v396
    %v406 = vsel %vm399, %v396, %v398
    %414 = vst [vmem:[#allocation2 + $0x188] sm:$0xff] %v400
    %415 = vst [vmem:[#allocation2 + $0x190] sm:$0xff] %v401
    %416 = vst [vmem:[#allocation2 + $0x198] sm:$0xff] %v402
    %417 = vst [vmem:[#allocation2 + $0x1a0] sm:$0xff] %v403
    %418 = vst [vmem:[#allocation2 + $0x1a8] sm:$0xff] %v404
    %419 = vst [vmem:[#allocation2 + $0x1b0] sm:$0xff] %v405
    %420 = vst [vmem:[#allocation2 + $0x1b8] sm:$0xff] %v406
    %v421 = vld [vmem:[#allocation3] sm:$0xff]
    %v422 = vld [vmem:[#allocation3 + $0x8] sm:$0xff]
    %v423 = vld [vmem:[#allocation3 + $0x10] sm:$0xff]
    %v424 = vld [vmem:[#allocation3 + $0x18] sm:$0xff]
    %v425 = vld [vmem:[#allocation3 + $0x20] sm:$0xff]
    %v426 = vld [vmem:[#allocation3 + $0x28] sm:$0xff]
    %v427 = vld [vmem:[#allocation3 + $0x30] sm:$0xff]
    %v428 = vld [vmem:[#allocation3 + $0x38] sm:$0xff]
    %437 = vrot.lane.b32.xlu0 %v421, 86
    %v438 = vpop.permute.xlu0 %437
    %439 = vrot.lane.b32.xlu0 %v422, 86
    %v440 = vpop.permute.xlu0 %439
    %441 = vrot.lane.b32.xlu0 %v423, 86
    %v442 = vpop.permute.xlu0 %441
    %443 = vrot.lane.b32.xlu0 %v424, 86
    %v444 = vpop.permute.xlu0 %443
    %445 = vrot.lane.b32.xlu0 %v425, 86
    %v446 = vpop.permute.xlu0 %445
    %447 = vrot.lane.b32.xlu0 %v426, 86
    %v448 = vpop.permute.xlu0 %447
    %449 = vrot.lane.b32.xlu0 %v427, 86
    %v450 = vpop.permute.xlu0 %449
    %451 = vrot.lane.b32.xlu0 %v428, 86
    %v452 = vpop.permute.xlu0 %451
    %vm453 = vcmask 703488
    %v454 = vsel %vm453, %v438, %v440
    %v455 = vsel %vm453, %v440, %v442
    %v456 = vsel %vm453, %v442, %v444
    %v457 = vsel %vm453, %v444, %v446
    %v458 = vsel %vm453, %v446, %v448
    %v459 = vsel %vm453, %v448, %v450
    %v460 = vsel %vm453, %v450, %v452
    %468 = vst [vmem:[#allocation2 + $0x1c0] sm:$0xff] %v454
    %469 = vst [vmem:[#allocation2 + $0x1c8] sm:$0xff] %v455
    %470 = vst [vmem:[#allocation2 + $0x1d0] sm:$0xff] %v456
    %471 = vst [vmem:[#allocation2 + $0x1d8] sm:$0xff] %v457
    %472 = vst [vmem:[#allocation2 + $0x1e0] sm:$0xff] %v458
    %473 = vst [vmem:[#allocation2 + $0x1e8] sm:$0xff] %v459
    %474 = vst [vmem:[#allocation2 + $0x1f0] sm:$0xff] %v460
    %v475 = vld [vmem:[%s1] sm:$0xff]
    %v476 = vld [vmem:[#allocation2] sm:$0xff]
    %v477 = vld [vmem:[#allocation2 + $0x8] sm:$0xff]
    %v478 = vld [vmem:[#allocation2 + $0x10] sm:$0xff]
    %v479 = vld [vmem:[#allocation2 + $0x18] sm:$0xff]
    %v480 = vld [vmem:[#allocation2 + $0x20] sm:$0xff]
    %v481 = vld [vmem:[#allocation2 + $0x28] sm:$0xff]
    %v482 = vld [vmem:[#allocation2 + $0x30] sm:$0xff]
    %v483 = vld [vmem:[#allocation2 + $0x38] sm:$0xff]
    %v484 = vld [vmem:[#allocation2 + $0x40] sm:$0xff]
    %v485 = vld [vmem:[#allocation2 + $0x48] sm:$0xff]
    %v486 = vld [vmem:[#allocation2 + $0x50] sm:$0xff]
    %v487 = vld [vmem:[#allocation2 + $0x58] sm:$0xff]
    %v488 = vld [vmem:[#allocation2 + $0x60] sm:$0xff]
    %v489 = vld [vmem:[#allocation2 + $0x68] sm:$0xff]
    %v490 = vld [vmem:[#allocation2 + $0x70] sm:$0xff]
    %v491 = vld [vmem:[#allocation2 + $0x78] sm:$0xff]
    %v492 = vld [vmem:[#allocation2 + $0x80] sm:$0xff]
    %v493 = vld [vmem:[#allocation2 + $0x88] sm:$0xff]
    %v494 = vld [vmem:[#allocation2 + $0x90] sm:$0xff]
    %v495 = vld [vmem:[#allocation2 + $0x98] sm:$0xff]
    %v496 = vld [vmem:[#allocation2 + $0xa0] sm:$0xff]
    %v497 = vld [vmem:[#allocation2 + $0xa8] sm:$0xff]
    %v498 = vld [vmem:[#allocation2 + $0xb0] sm:$0xff]
    %v499 = vld [vmem:[#allocation2 + $0xb8] sm:$0xff]
    %v500 = vld [vmem:[#allocation2 + $0xc0] sm:$0xff]
    %v501 = vld [vmem:[#allocation2 + $0xc8] sm:$0xff]
    %v502 = vld [vmem:[#allocation2 + $0xd0] sm:$0xff]
    %v503 = vld [vmem:[#allocation2 + $0xd8] sm:$0xff]
    %v504 = vld [vmem:[#allocation2 + $0xe0] sm:$0xff]
    %v505 = vld [vmem:[#allocation2 + $0xe8] sm:$0xff]
    %v506 = vld [vmem:[#allocation2 + $0xf0] sm:$0xff]
    %v507 = vld [vmem:[#allocation2 + $0xf8] sm:$0xff]
    %v508 = vld [vmem:[#allocation2 + $0x100] sm:$0xff]
    %v509 = vld [vmem:[#allocation2 + $0x108] sm:$0xff]
    %v510 = vld [vmem:[#allocation2 + $0x110] sm:$0xff]
    %v511 = vld [vmem:[#allocation2 + $0x118] sm:$0xff]
    %v512 = vld [vmem:[#allocation2 + $0x120] sm:$0xff]
    %v513 = vld [vmem:[#allocation2 + $0x128] sm:$0xff]
    %v514 = vld [vmem:[#allocation2 + $0x130] sm:$0xff]
    %v515 = vld [vmem:[#allocation2 + $0x138] sm:$0xff]
    %v516 = vld [vmem:[#allocation2 + $0x140] sm:$0xff]
    %v517 = vld [vmem:[#allocation2 + $0x148] sm:$0xff]
    %v518 = vld [vmem:[#allocation2 + $0x150] sm:$0xff]
    %v519 = vld [vmem:[#allocation2 + $0x158] sm:$0xff]
    %v520 = vld [vmem:[#allocation2 + $0x160] sm:$0xff]
    %v521 = vld [vmem:[#allocation2 + $0x168] sm:$0xff]
    %v522 = vld [vmem:[#allocation2 + $0x170] sm:$0xff]
    %v523 = vld [vmem:[#allocation2 + $0x178] sm:$0xff]
    %v524 = vld [vmem:[#allocation2 + $0x180] sm:$0xff]
    %v525 = vld [vmem:[#allocation2 + $0x188] sm:$0xff]
    %v526 = vld [vmem:[#allocation2 + $0x190] sm:$0xff]
    %v527 = vld [vmem:[#allocation2 + $0x198] sm:$0xff]
    %v528 = vld [vmem:[#allocation2 + $0x1a0] sm:$0xff]
    %v529 = vld [vmem:[#allocation2 + $0x1a8] sm:$0xff]
    %v530 = vld [vmem:[#allocation2 + $0x1b0] sm:$0xff]
    %v531 = vld [vmem:[#allocation2 + $0x1b8] sm:$0xff]
    %v532 = vld [vmem:[#allocation2 + $0x1c0] sm:$0xff]
    %v533 = vld [vmem:[#allocation2 + $0x1c8] sm:$0xff]
    %v534 = vld [vmem:[#allocation2 + $0x1d0] sm:$0xff]
    %v535 = vld [vmem:[#allocation2 + $0x1d8] sm:$0xff]
    %v536 = vld [vmem:[#allocation2 + $0x1e0] sm:$0xff]
    %v537 = vld [vmem:[#allocation2 + $0x1e8] sm:$0xff]
    %v538 = vld [vmem:[#allocation2 + $0x1f0] sm:$0xff]
    %v539 = vld [vmem:[%s2] sm:$0xff]
    %541 = vset.pattern.permute.xlu0 0
    %542 = vperm.xlu0 %541, %v539
    %v543 = vpop.permute.xlu0 %542
    %vm545 = vcmask 588800
    %v547 = vsel %vm545, %v475, 0
    %549 = vmatpush.msra.mxu0 0.0
    %550 = vmatpush.msra.mxu0 0.0
    %551 = vmatpush.msra.mxu0 0.0
    %552 = vmatpush.msra.mxu0 0.0
    %553 = vmatpush.msra.mxu0 0.0
    %554 = vmatpush.msra.mxu0 0.0
    %555 = vmatpush.msra.mxu0 0.0
    %556 = vmatpush.msra.mxu0 %v532
    %557 = vmatpush.msra.mxu0 %v525
    %558 = vmatpush.msra.mxu0 %v518
    %559 = vmatpush.msra.mxu0 %v511
    %560 = vmatpush.msra.mxu0 %v504
    %561 = vmatpush.msra.mxu0 %v497
    %562 = vmatpush.msra.mxu0 %v490
    %563 = vmatpush.msra.mxu0 %v483
    %564 = vmatpush.msra.mxu0 %v476
    %565 = vmatmul.f32.gmra.mxu0 %v547
    %v566 = vpop.f32.mrf.mxu0
    %v567 = vadd.f32 %v543, %v566
    %568 = vdwg.mxu0
    %569 = vmatpush.msra.mxu0 0.0
    %570 = vmatpush.msra.mxu0 0.0
    %571 = vmatpush.msra.mxu0 0.0
    %572 = vmatpush.msra.mxu0 0.0
    %573 = vmatpush.msra.mxu0 0.0
    %574 = vmatpush.msra.mxu0 0.0
    %575 = vmatpush.msra.mxu0 0.0
    %576 = vmatpush.msra.mxu0 %v533
    %577 = vmatpush.msra.mxu0 %v526
    %578 = vmatpush.msra.mxu0 %v519
    %579 = vmatpush.msra.mxu0 %v512
    %580 = vmatpush.msra.mxu0 %v505
    %581 = vmatpush.msra.mxu0 %v498
    %582 = vmatpush.msra.mxu0 %v491
    %583 = vmatpush.msra.mxu0 %v484
    %584 = vmatpush.msra.mxu0 %v477
    %585 = vmatmul.f32.gmra.mxu0 %v547
    %v586 = vpop.f32.mrf.mxu0
    %v587 = vadd.f32 %v543, %v586
    %588 = vdwg.mxu0
    %589 = vmatpush.msra.mxu0 0.0
    %590 = vmatpush.msra.mxu0 0.0
    %591 = vmatpush.msra.mxu0 0.0
    %592 = vmatpush.msra.mxu0 0.0
    %593 = vmatpush.msra.mxu0 0.0
    %594 = vmatpush.msra.mxu0 0.0
    %595 = vmatpush.msra.mxu0 0.0
    %596 = vmatpush.msra.mxu0 %v534
    %597 = vmatpush.msra.mxu0 %v527
    %598 = vmatpush.msra.mxu0 %v520
    %599 = vmatpush.msra.mxu0 %v513
    %600 = vmatpush.msra.mxu0 %v506
    %601 = vmatpush.msra.mxu0 %v499
    %602 = vmatpush.msra.mxu0 %v492
    %603 = vmatpush.msra.mxu0 %v485
    %604 = vmatpush.msra.mxu0 %v478
    %605 = vmatmul.f32.gmra.mxu0 %v547
    %v606 = vpop.f32.mrf.mxu0
    %v607 = vadd.f32 %v543, %v606
    %608 = vdwg.mxu0
    %609 = vmatpush.msra.mxu0 0.0
    %610 = vmatpush.msra.mxu0 0.0
    %611 = vmatpush.msra.mxu0 0.0
    %612 = vmatpush.msra.mxu0 0.0
    %613 = vmatpush.msra.mxu0 0.0
    %614 = vmatpush.msra.mxu0 0.0
    %615 = vmatpush.msra.mxu0 0.0
    %616 = vmatpush.msra.mxu0 %v535
    %617 = vmatpush.msra.mxu0 %v528
    %618 = vmatpush.msra.mxu0 %v521
    %619 = vmatpush.msra.mxu0 %v514
    %620 = vmatpush.msra.mxu0 %v507
    %621 = vmatpush.msra.mxu0 %v500
    %622 = vmatpush.msra.mxu0 %v493
    %623 = vmatpush.msra.mxu0 %v486
    %624 = vmatpush.msra.mxu0 %v479
    %625 = vmatmul.f32.gmra.mxu0 %v547
    %v626 = vpop.f32.mrf.mxu0
    %v627 = vadd.f32 %v543, %v626
    %628 = vdwg.mxu0
    %629 = vmatpush.msra.mxu0 0.0
    %630 = vmatpush.msra.mxu0 0.0
    %631 = vmatpush.msra.mxu0 0.0
    %632 = vmatpush.msra.mxu0 0.0
    %633 = vmatpush.msra.mxu0 0.0
    %634 = vmatpush.msra.mxu0 0.0
    %635 = vmatpush.msra.mxu0 0.0
    %636 = vmatpush.msra.mxu0 %v536
    %637 = vmatpush.msra.mxu0 %v529
    %638 = vmatpush.msra.mxu0 %v522
    %639 = vmatpush.msra.mxu0 %v515
    %640 = vmatpush.msra.mxu0 %v508
    %641 = vmatpush.msra.mxu0 %v501
    %642 = vmatpush.msra.mxu0 %v494
    %643 = vmatpush.msra.mxu0 %v487
    %644 = vmatpush.msra.mxu0 %v480
    %645 = vmatmul.f32.gmra.mxu0 %v547
    %v646 = vpop.f32.mrf.mxu0
    %v647 = vadd.f32 %v543, %v646
    %648 = vdwg.mxu0
    %649 = vmatpush.msra.mxu0 0.0
    %650 = vmatpush.msra.mxu0 0.0
    %651 = vmatpush.msra.mxu0 0.0
    %652 = vmatpush.msra.mxu0 0.0
    %653 = vmatpush.msra.mxu0 0.0
    %654 = vmatpush.msra.mxu0 0.0
    %655 = vmatpush.msra.mxu0 0.0
    %656 = vmatpush.msra.mxu0 %v537
    %657 = vmatpush.msra.mxu0 %v530
    %658 = vmatpush.msra.mxu0 %v523
    %659 = vmatpush.msra.mxu0 %v516
    %660 = vmatpush.msra.mxu0 %v509
    %661 = vmatpush.msra.mxu0 %v502
    %662 = vmatpush.msra.mxu0 %v495
    %663 = vmatpush.msra.mxu0 %v488
    %664 = vmatpush.msra.mxu0 %v481
    %665 = vmatmul.f32.gmra.mxu0 %v547
    %v666 = vpop.f32.mrf.mxu0
    %v667 = vadd.f32 %v543, %v666
    %668 = vdwg.mxu0
    %669 = vmatpush.msra.mxu0 0.0
    %670 = vmatpush.msra.mxu0 0.0
    %671 = vmatpush.msra.mxu0 0.0
    %672 = vmatpush.msra.mxu0 0.0
    %673 = vmatpush.msra.mxu0 0.0
    %674 = vmatpush.msra.mxu0 0.0
    %675 = vmatpush.msra.mxu0 0.0
    %676 = vmatpush.msra.mxu0 %v538
    %677 = vmatpush.msra.mxu0 %v531
    %678 = vmatpush.msra.mxu0 %v524
    %679 = vmatpush.msra.mxu0 %v517
    %680 = vmatpush.msra.mxu0 %v510
    %681 = vmatpush.msra.mxu0 %v503
    %682 = vmatpush.msra.mxu0 %v496
    %683 = vmatpush.msra.mxu0 %v489
    %684 = vmatpush.msra.mxu0 %v482
    %685 = vmatmul.f32.gmra.mxu0 %v547
    %v686 = vpop.f32.mrf.mxu0
    %v687 = vadd.f32 %v543, %v686
    %688 = vdwg.mxu0
    %v689 = vmax.f32 %v567, 0.0
    %v690 = vmax.f32 %v587, 0.0
    %v691 = vmax.f32 %v607, 0.0
    %v692 = vmax.f32 %v627, 0.0
    %v693 = vmax.f32 %v647, 0.0
    %v694 = vmax.f32 %v667, 0.0
    %v695 = vmax.f32 %v687, 0.0
    %696 = vst [vmem:[#allocation6] sm:$0xff] %v689
    %697 = vst [vmem:[#allocation6 + $0x8] sm:$0xff] %v690
    %698 = vst [vmem:[#allocation6 + $0x10] sm:$0xff] %v691
    %699 = vst [vmem:[#allocation6 + $0x18] sm:$0xff] %v692
    %700 = vst [vmem:[#allocation6 + $0x20] sm:$0xff] %v693
    %701 = vst [vmem:[#allocation6 + $0x28] sm:$0xff] %v694
    %702 = vst [vmem:[#allocation6 + $0x30] sm:$0xff] %v695
    // Predicated region
    $region18: #{tpu_custom_call.1} parent=1 // pred_check
      _
    $region19: #{tpu_custom_call.1} parent=1 // pred_check_branch
      %704 = sbr.rel (0) target = $region21
    $region20: #{tpu_custom_call.1} parent=1 // pred_region
      %706 = vsyncadd [#allocation5], 0
      %s708 = sshll.u32 [#allocation6], 4
      %s709 = int_to_ptr.vmem [resolvable:$true] %s708
      %s710 = sshll.u32 %s3, 4
      %s711 = int_to_ptr.hbm [resolvable:$true] %s710
      %713 = dma.vmem_to_hbm [thread:$0]  %s709, 896, %s711, [#allocation5]
    $region21: #{tpu_custom_call.1} parent=1 // pred_fallthru
      _
    // Predicated region
    $region22: #{tpu_custom_call.1} parent=1 // pred_check
      _
    $region23: #{tpu_custom_call.1} parent=1 // pred_check_branch
      %715 = sbr.rel (0) target = $region25
    $region24: #{tpu_custom_call.1} parent=1 // pred_region
      %717 = dma.done [#allocation5], 896
    $region25: #{tpu_custom_call.1} parent=1 // pred_fallthru
      _
    %718 = vsyncpa [#allocation4], 1
    %719 = vsyncpa [#allocation5], 1

</llo_original>
